<compile_context>
chip_gen: v5e
topology: v5e:2x2
jax: 0.10.0
libtpu: 0.0.40
codegen_flags: <defaults>
</compile_context>

<pallas_src>
import jax
import jax.numpy as jnp
from jax.experimental import pallas as pl
from jax.experimental.pallas import tpu as pltpu

LANES = 128
TILE_BYTES = 4 << 20          # per-input, per-buffer VMEM budget (4 MiB)


class CfgNode(dict):
    """Minimal stand-in for the config object stored by LossBase."""
    pass


class LossBase:
    """Faithful port of the abstract base class."""

    def __init__(self, cfg: CfgNode):
        self.cfg = cfg

    def forward(self, outputs, labels):
        # TODO(synk): reference forward is abstract (raises NotImplementedError);
        # concrete subclasses supply the loss — see MSELoss below.
        raise NotImplementedError

    def __call__(self, outputs, labels):
        return self.forward(outputs, labels)


def _num_splits():
    # 2 TensorCores per chip on v7x (shard the row range across them);
    # v5e / v6e have a single TC, where a 2-way split is pure bookkeeping.
    try:
        kind = jax.devices()[0].device_kind.lower()
    except Exception:
        return 1
    return 2 if "v7" in kind else 1


def _sublane_multiple(dtype):
    # f32 -> 8, bf16 -> 16, int8/fp8 -> 32 (sub-32-bit dtypes pack along sublanes).
    return max(8, 32 // jnp.dtype(dtype).itemsize)


# ----------------------------------------------------------------------------
# Pallas kernel: per-split accumulation of squared residuals into VMEM
# scratch.  The inner loop is pure VPU work (acc += d*d); the single cheap
# sublane fold into the tiny (8, 128) output block happens once per split.
# ----------------------------------------------------------------------------
def _make_kernel(tile_rows, steps, rows, needs_mask):
    def kernel(o_ref, l_ref, out_ref, acc_ref):
        i = pl.program_id(0)
        j = pl.program_id(1)

        @pl.when(j == 0)
        def _():
            acc_ref[...] = jnp.zeros_like(acc_ref)

        d = o_ref[...].astype(jnp.float32) - l_ref[...].astype(jnp.float32)
        if needs_mask:
            # Mask rows past the real (lane-folded) data; `rows`, `steps`,
            # `tile_rows` are trace-time constants.
            row0 = (i * steps + j) * tile_rows
            ridx = jax.lax.broadcasted_iota(jnp.int32, (tile_rows, 1), 0) + row0
            d = jnp.where(ridx < rows, d, 0.0)
        acc_ref[...] += d * d

        @pl.when(j == steps - 1)
        def _():
            # One sublane fold per split; rides otherwise-idle slots.
            out_ref[...] = acc_ref[...].reshape(tile_rows // 8, 8, LANES).sum(axis=0)

    return kernel


def _pallas_mse(outputs, labels):
    assert outputs.shape == labels.shape, (outputs.shape, labels.shape)
    n_true = int(outputs.size)

    of = outputs.reshape(-1)
    lf = labels.reshape(-1)

    sub = max(_sublane_multiple(of.dtype), _sublane_multiple(lf.dtype))
    align = sub * LANES
    pad = (-n_true) % align
    if pad:
        # TODO(synk): only element counts that are not a multiple of sub*128
        # take this one small pad-to-tile copy; typical ML tensor sizes skip it.
        # Zero padding adds 0 to the sum of squares; we divide by n_true below.
        of = jnp.pad(of, (0, pad))
        lf = jnp.pad(lf, (0, pad))

    rows = (n_true + pad) // LANES                 # multiple of `sub`
    o2 = of.reshape(rows, LANES)
    l2 = lf.reshape(rows, LANES)

    o_isz = jnp.dtype(o2.dtype).itemsize
    l_isz = jnp.dtype(l2.dtype).itemsize
    tile_rows_max = TILE_BYTES // (LANES * max(o_isz, l_isz))  # 8192 f32 / 16384 bf16
    tile_rows = min(tile_rows_max, rows)           # multiple of `sub`, <= rows

    num_splits = _num_splits()
    blocks_total = -(-rows // tile_rows)
    steps = -(-blocks_total // num_splits)
    needs_mask = num_splits * steps * tile_rows > rows
    last_block = blocks_total - 1

    def in_map(i, j):
        # Clamp fully-out-of-range blocks back onto the last real block;
        # the in-kernel row mask zeroes their contribution.
        return (jnp.minimum(i * steps + j, last_block), 0)

    in_specs = [pl.BlockSpec((tile_rows, LANES), in_map),
                pl.BlockSpec((tile_rows, LANES), in_map)]
    out_spec = pl.BlockSpec((8, LANES), lambda i, j: (i, 0))

    # 2 double-buffered input tiles + f32 accumulator scratch + headroom.
    vmem_limit = (2 * tile_rows * LANES * (o_isz + l_isz)
                  + tile_rows * LANES * 4
                  + (8 << 20))

    partials = pl.pallas_call(
        _make_kernel(tile_rows, steps, rows, needs_mask),
        out_shape=jax.ShapeDtypeStruct((num_splits * 8, LANES), jnp.float32),
        grid=(num_splits, steps),
        in_specs=in_specs,
        out_specs=out_spec,
        scratch_shapes=[pltpu.VMEM((tile_rows, LANES), jnp.float32)],
        compiler_params=pltpu.CompilerParams(
            dimension_semantics=("parallel", "arbitrary"),
            vmem_limit_bytes=int(vmem_limit)),
        cost_estimate=pl.CostEstimate(
            flops=3 * rows * LANES,
            bytes_accessed=rows * LANES * (o_isz + l_isz) + num_splits * 8 * LANES * 4,
            transcendentals=0),
    )(o2, l2)

    # Single tiny cross-lane / cross-split reduce + mean scale, done once.
    return jnp.sum(partials) / jnp.float32(n_true)


class MSELoss(LossBase):
    """Representative concrete subclass whose hot path runs in Pallas."""

    def forward(self, outputs, labels):
        return _pallas_mse(outputs, labels)


if __name__ == "__main__":
    cfg = CfgNode()

    key = jax.random.PRNGKey(0)
    k1, k2 = jax.random.split(key)
    # NCHW, small shapes: batch=2, channels=4, spatial=16x16.
    outputs = jax.random.normal(k1, (2, 4, 16, 16), dtype=jnp.float32)
    labels = jax.random.normal(k2, (2, 4, 16, 16), dtype=jnp.float32)

    # Abstract base still raises, exactly like the PyTorch reference.
    base = LossBase(cfg)
    try:
        base(outputs, labels)
        raise AssertionError("LossBase.forward should raise NotImplementedError")
    except NotImplementedError:
        pass

    loss_fn = MSELoss(cfg)
    loss = loss_fn(outputs, labels)
    jax.block_until_ready(loss)
    ref = jnp.mean((outputs - labels) ** 2)
    assert jnp.allclose(loss, ref, atol=1e-5, rtol=1e-4), (loss, ref)

    # Second check: non-aligned size that exercises the pad-to-lane and the
    # in-kernel tail-mask paths (multiple row tiles).
    k3, k4 = jax.random.split(k2)
    o_big = jax.random.normal(k3, (1200, 1000), dtype=jnp.float32)
    l_big = jax.random.normal(k4, (1200, 1000), dtype=jnp.float32)
    loss_big = loss_fn(o_big, l_big)
    jax.block_until_ready(loss_big)
    ref_big = jnp.mean((o_big - l_big) ** 2)
    assert jnp.allclose(loss_big, ref_big, atol=1e-5, rtol=1e-4), (loss_big, ref_big)

    print("KERNEL_OK")
</pallas_src>

<mosaic_0001>
module attributes {stable_mosaic.version = 11 : i64} {
  func.func @kernel(%arg0: i32, %arg1: i32, %arg2: memref<16x128xf32, #tpu.memory_space<vmem>>, %arg3: memref<16x128xf32, #tpu.memory_space<vmem>>, %arg4: memref<8x128xf32, #tpu.memory_space<vmem>>, %arg5: memref<16x128xf32, #tpu.memory_space<vmem>>) attributes {dimension_semantics = [#tpu.dimension_semantics<parallel>, #tpu.dimension_semantics<arbitrary>], iteration_bounds = array<i64: 1, 1>, scalar_prefetch = 0 : i64, scratch_operands = 1 : i64, tpu.core_type = #tpu.core_type<tc>, window_params = [{transform_indices = @transform_0, window_bounds = array<i64: 16, 128>}, {transform_indices = @transform_1, window_bounds = array<i64: 16, 128>}, {transform_indices = @transform_2, window_bounds = array<i64: 8, 128>}]} {
    %c0_i32 = arith.constant 0 : i32
    %0 = arith.cmpi eq, %arg1, %c0_i32 : i32
    %1 = arith.extui %0 : i1 to i32
    %c0_i32_0 = arith.constant 0 : i32
    %2 = arith.cmpi ne, %1, %c0_i32_0 : i32
    scf.if %2 {
      %cst = arith.constant 0.000000e+00 : f32
      %13 = vector.broadcast %cst : f32 to vector<16x128xf32>
      %c0_10 = arith.constant 0 : index
      %c0_11 = arith.constant 0 : index
      %14 = vector.load %arg5[%c0_10, %c0_11] : memref<16x128xf32, #tpu.memory_space<vmem>>, vector<16x128xf32>
      tpu.vector_store %arg5[%c0_10, %c0_11], %13 {strides = array<i32>} : memref<16x128xf32, #tpu.memory_space<vmem>>, vector<16x128xf32>,
    } else {
    }
    %c0 = arith.constant 0 : index
    %c0_1 = arith.constant 0 : index
    %3 = vector.load %arg2[%c0, %c0_1] : memref<16x128xf32, #tpu.memory_space<vmem>>, vector<16x128xf32>
    %c0_2 = arith.constant 0 : index
    %c0_3 = arith.constant 0 : index
    %4 = vector.load %arg3[%c0_2, %c0_3] : memref<16x128xf32, #tpu.memory_space<vmem>>, vector<16x128xf32>
    %5 = arith.subf %3, %4 : vector<16x128xf32>
    %c0_4 = arith.constant 0 : index
    %c0_5 = arith.constant 0 : index
    %6 = vector.load %arg5[%c0_4, %c0_5] : memref<16x128xf32, #tpu.memory_space<vmem>>, vector<16x128xf32>
    %7 = arith.mulf %5, %5 : vector<16x128xf32>
    %8 = arith.addf %6, %7 : vector<16x128xf32>
    %c0_6 = arith.constant 0 : index
    %c0_7 = arith.constant 0 : index
    %9 = vector.load %arg5[%c0_6, %c0_7] : memref<16x128xf32, #tpu.memory_space<vmem>>, vector<16x128xf32>
    tpu.vector_store %arg5[%c0_6, %c0_7], %8 {strides = array<i32>} : memref<16x128xf32, #tpu.memory_space<vmem>>, vector<16x128xf32>,
    %c0_i32_8 = arith.constant 0 : i32
    %10 = arith.cmpi eq, %arg1, %c0_i32_8 : i32
    %11 = arith.extui %10 : i1 to i32
    %c0_i32_9 = arith.constant 0 : i32
    %12 = arith.cmpi ne, %11, %c0_i32_9 : i32
    scf.if %12 {
      %c0_10 = arith.constant 0 : index
      %c0_11 = arith.constant 0 : index
      %13 = vector.load %arg5[%c0_10, %c0_11] : memref<16x128xf32, #tpu.memory_space<vmem>>, vector<16x128xf32>
      %14 = vector.shape_cast %13 : vector<16x128xf32> to vector<2x8x128xf32>
      %cst = arith.constant dense<0.000000e+00> : vector<8x128xf32>
      %15 = vector.multi_reduction <add>, %14, %cst [0] : vector<2x8x128xf32> to vector<8x128xf32>
      %c0_12 = arith.constant 0 : index
      %c0_13 = arith.constant 0 : index
      %16 = vector.load %arg4[%c0_12, %c0_13] : memref<8x128xf32, #tpu.memory_space<vmem>>, vector<8x128xf32>
      tpu.vector_store %arg4[%c0_12, %c0_13], %15 {strides = array<i32>} : memref<8x128xf32, #tpu.memory_space<vmem>>, vector<8x128xf32>,
    } else {
    }
    return
  }
  func.func @transform_0(%arg0: i32, %arg1: i32) -> (i32, i32) {
    %c1_i32 = arith.constant 1 : i32
    %0 = arith.muli %arg0, %c1_i32 : i32
    %1 = arith.addi %0, %arg1 : i32
    %c0_i32 = arith.constant 0 : i32
    %2 = arith.minsi %1, %c0_i32 : i32
    %c0_i32_0 = arith.constant 0 : i32
    %c0_i32_1 = arith.constant 0 : i32
    return %2, %c0_i32_0 : i32, i32
  }
  func.func @transform_1(%arg0: i32, %arg1: i32) -> (i32, i32) {
    %c1_i32 = arith.constant 1 : i32
    %0 = arith.muli %arg0, %c1_i32 : i32
    %1 = arith.addi %0, %arg1 : i32
    %c0_i32 = arith.constant 0 : i32
    %2 = arith.minsi %1, %c0_i32 : i32
    %c0_i32_0 = arith.constant 0 : i32
    %c0_i32_1 = arith.constant 0 : i32
    return %2, %c0_i32_0 : i32, i32
  }
  func.func @transform_2(%arg0: i32, %arg1: i32) -> (i32, i32) {
    %c0_i32 = arith.constant 0 : i32
    %c0_i32_0 = arith.constant 0 : i32
    return %arg0, %c0_i32 : i32, i32
  }
}

</mosaic_0001>

<llo_original>
// kernel: tpu_custom_call.1
$region0: #{tpu_custom_call.1}
  #allocation0 [shape = 'u32[]', space=smem, size = 0x4, offset = 0x4, fixed_abs, tag = 'smem constant byte address 0x4 - core index']
  #allocation1 [shape = 'u32[72,128]{1,0:T(1,128)}', space=vmem, size = 0x9000, scoped, tag = 'internal scratch']
  #allocation2 [shape = 'f32[16,128]{1,0:T(8,128)}', space=vmem, size = 0x2000, scoped, tag = 'scratch operand']
  %s0 = inlined_call_operand.hbm [shape: f32[16,128], index: 0, kind: input, shape index: {}]
  %s1 = inlined_call_operand.hbm [shape: f32[16,128], index: 1, kind: input, shape index: {}]
  %s2 = inlined_call_operand.hbm [shape: f32[8,128], index: 2, kind: output, shape index: {}]
  %s3 = sld [smem:[#allocation0]]
  $region34: #{tpu_custom_call.1} parent=0
    _
  %s5 = ssub.s32 1, %s3
  %s6 = scalar_select 0, %s5, %s3
  $region1: #{tpu_custom_call.1} parent=0
    #allocation3 [shape = 'u8[8192]{0}', space=vmem, size = 0x2000, scoped, tag = 'input window, operand 0, single buffered']
    #allocation4 [shape = 's32[1]{0}', space=sflag, size = 0x4, scoped, tag = 'scoped memory for tpu_custom_call.1']
    #allocation5 [shape = 's32[1]{0}', space=sflag, size = 0x4, scoped, tag = 'scoped memory for tpu_custom_call.1']
    #allocation6 [shape = 'u8[8192]{0}', space=vmem, size = 0x2000, scoped, tag = 'input window, operand 1, single buffered']
    #allocation7 [shape = 's32[1]{0}', space=sflag, size = 0x4, scoped, tag = 'scoped memory for tpu_custom_call.1']
    #allocation8 [shape = 'u8[4096]{0}', space=vmem, size = 0x1000, scoped, tag = 'output window, operand 0, single buffered']
    %7 = vsyncpa [#allocation4], 0
    %8 = vsyncpa [#allocation7], 0
    %9 = vsyncpa [#allocation5], 0
    // Predicated region
    $region2: #{tpu_custom_call.1} parent=1 // pred_check
      _
    $region3: #{tpu_custom_call.1} parent=1 // pred_check_branch
      %11 = sbr.rel (0) target = $region5
    $region4: #{tpu_custom_call.1} parent=1 // pred_region
      %s12 = sadd.s32 0, 0
      %p13 = scmp.lt.s32.totalorder %s12, 0
      %s14 = scalar_select %p13, %s12, 0
      %s15 = smul.u32 2, %s14
      %17 = vsyncadd [#allocation4], 0
      %s18 = smul.addr %s15, 8
      %s19 = scalar_lea.hbm %s0, %s18
      %s20 = sshll.u32 %s19, 4
      %s21 = int_to_ptr.hbm [resolvable:$true] %s20
      %s22 = sshll.u32 [#allocation3], 4
      %s23 = int_to_ptr.vmem [resolvable:$true] %s22
      %28 = dma.hbm_to_vmem [thread:$0]  %s21, 256, %s23, [#allocation4], 128, 128, 8
    $region5: #{tpu_custom_call.1} parent=1 // pred_fallthru
      _
    // Predicated region
    $region6: #{tpu_custom_call.1} parent=1 // pred_check
      _
    $region7: #{tpu_custom_call.1} parent=1 // pred_check_branch
      %30 = sbr.rel (0) target = $region9
    $region8: #{tpu_custom_call.1} parent=1 // pred_region
      %s31 = sadd.s32 0, 0
      %p32 = scmp.lt.s32.totalorder %s31, 0
      %s33 = scalar_select %p32, %s31, 0
      %s34 = smul.u32 2, %s33
      %36 = vsyncadd [#allocation7], 0
      %s37 = smul.addr %s34, 8
      %s38 = scalar_lea.hbm %s1, %s37
      %s39 = sshll.u32 %s38, 4
      %s40 = int_to_ptr.hbm [resolvable:$true] %s39
      %s41 = sshll.u32 [#allocation6], 4
      %s42 = int_to_ptr.vmem [resolvable:$true] %s41
      %47 = dma.hbm_to_vmem [thread:$0]  %s40, 256, %s42, [#allocation7], 128, 128, 8
    $region9: #{tpu_custom_call.1} parent=1 // pred_fallthru
      _
    // Predicated region
    $region10: #{tpu_custom_call.1} parent=1 // pred_check
      _
    $region11: #{tpu_custom_call.1} parent=1 // pred_check_branch
      %49 = sbr.rel (0) target = $region13
    $region12: #{tpu_custom_call.1} parent=1 // pred_region
      %51 = dma.done [#allocation4], 256
    $region13: #{tpu_custom_call.1} parent=1 // pred_fallthru
      _
    // Predicated region
    $region14: #{tpu_custom_call.1} parent=1 // pred_check
      _
    $region15: #{tpu_custom_call.1} parent=1 // pred_check_branch
      %53 = sbr.rel (0) target = $region17
    $region16: #{tpu_custom_call.1} parent=1 // pred_region
      %55 = dma.done [#allocation7], 256
    $region17: #{tpu_custom_call.1} parent=1 // pred_fallthru
      _
    %s56 = sadd.s32 0, 0
    %p57 = scmp.lt.s32.totalorder %s56, 0
    %s58 = scalar_select %p57, %s56, 0
    %s59 = smul.u32 2, %s58
    %s60 = sadd.s32 0, 0
    %p61 = scmp.lt.s32.totalorder %s60, 0
    %s62 = scalar_select %p61, %s60, 0
    %s63 = smul.u32 2, %s62
    %p64 = scmp.eq.s32.totalorder 0, 0
    // Predicated region
    $region18: #{tpu_custom_call.1} parent=1 // pred_check
      %p65 = pneg %p64
    $region19: #{tpu_custom_call.1} parent=1 // pred_check_branch
      %67 = sbr.rel (%p65) target = $region21
    $region20: #{tpu_custom_call.1} parent=1 // pred_region
      %68 = vst [vmem:[#allocation2] sm:$0xff] 0.0
      %69 = vst [vmem:[#allocation2 + $0x8] sm:$0xff] 0.0
    $region21: #{tpu_custom_call.1} parent=1 // pred_fallthru
      _
    %v70 = vld [vmem:[#allocation3] sm:$0xff]
    %v71 = vld [vmem:[#allocation3 + $0x8] sm:$0xff]
    %v72 = vld [vmem:[#allocation6] sm:$0xff]
    %v73 = vld [vmem:[#allocation6 + $0x8] sm:$0xff]
    %v74 = vsub.f32 %v70, %v72
    %v75 = vsub.f32 %v71, %v73
    %v76 = vld [vmem:[#allocation2] sm:$0xff]
    %v77 = vld [vmem:[#allocation2 + $0x8] sm:$0xff]
    %v78 = vmul.f32 %v74, %v74
    %v79 = vmul.f32 %v75, %v75
    %v80 = vadd.f32 %v76, %v78
    %v81 = vadd.f32 %v77, %v79
    %82 = vst [vmem:[#allocation2] sm:$0xff] %v80
    %83 = vst [vmem:[#allocation2 + $0x8] sm:$0xff] %v81
    // Predicated region
    $region22: #{tpu_custom_call.1} parent=1 // pred_check
      %p84 = pneg %p64
    $region23: #{tpu_custom_call.1} parent=1 // pred_check_branch
      %86 = sbr.rel (%p84) target = $region25
    $region24: #{tpu_custom_call.1} parent=1 // pred_region
      %v87 = vld [vmem:[#allocation2] sm:$0xff]
      %v88 = vld [vmem:[#allocation2 + $0x8] sm:$0xff]
      %v89 = vadd.f32 %v87, %v88
      %90 = vst [vmem:[#allocation8] sm:$0xff] %v89
    $region25: #{tpu_custom_call.1} parent=1 // pred_fallthru
      _
    // Predicated region
    $region26: #{tpu_custom_call.1} parent=1 // pred_check
      _
    $region27: #{tpu_custom_call.1} parent=1 // pred_check_branch
      %92 = sbr.rel (0) target = $region29
    $region28: #{tpu_custom_call.1} parent=1 // pred_region
      %94 = vsyncadd [#allocation5], 0
      %s96 = sshll.u32 [#allocation8], 4
      %s97 = int_to_ptr.vmem [resolvable:$true] %s96
      %s98 = sshll.u32 %s2, 4
      %s99 = int_to_ptr.hbm [resolvable:$true] %s98
      %101 = dma.vmem_to_hbm [thread:$0]  %s97, 128, %s99, [#allocation5]
    $region29: #{tpu_custom_call.1} parent=1 // pred_fallthru
      _
    // Predicated region
    $region30: #{tpu_custom_call.1} parent=1 // pred_check
      _
    $region31: #{tpu_custom_call.1} parent=1 // pred_check_branch
      %103 = sbr.rel (0) target = $region33
    $region32: #{tpu_custom_call.1} parent=1 // pred_region
      %105 = dma.done [#allocation5], 128
    $region33: #{tpu_custom_call.1} parent=1 // pred_fallthru
      _
    %106 = vsyncpa [#allocation4], 1
    %107 = vsyncpa [#allocation7], 1
    %108 = vsyncpa [#allocation5], 1

</llo_original>
